<compile_context>
chip_gen: v7x
topology: tpu7x:2x2x1
jax: 0.10.0
libtpu: 0.0.40
codegen_flags: <defaults>
</compile_context>

<pallas_src>
import jax
import jax.numpy as jnp
from jax.experimental import pallas as pl
from jax.experimental.pallas import tpu as pltpu

IN_DIM = 392
HID_DIM = 470
OUT_DIM = 2
HID_PAD = 512  # 470 rounded up to a lane/MXU-friendly multiple of 128


def _round_up(n, m):
    return ((n + m - 1) // m) * m


def mlp_shallow_kernel(x_ref, w1_ref, b1_ref, w2_ref, b2_ref, o_ref):
    # Layer 1 on the MXU: bf16 operands, f32 accumulation; bias + ReLU on VPU.
    h1 = jnp.dot(x_ref[...], w1_ref[...], preferred_element_type=jnp.float32)
    h1 = jnp.maximum(h1 + b1_ref[...], 0.0)                 # (TB, 512) f32

    # Layer 2 (512 -> 2) OFF the MXU: per-column VPU multiply + lane reduction.
    # w2_ref is (2, 512) f32; each row broadcast-multiplies h1, then XLU-reduce.
    w2 = w2_ref[...]
    y0 = jnp.sum(h1 * w2[0:1, :], axis=-1, keepdims=True)   # (TB, 1)
    y1 = jnp.sum(h1 * w2[1:2, :], axis=-1, keepdims=True)   # (TB, 1)
    y = jnp.concatenate([y0, y1], axis=-1) + b2_ref[...]    # (TB, 2) + (1, 2)
    o_ref[...] = y.astype(o_ref.dtype)


def _compute_tiling(B, tb):
    """Pick a batch tile that minimizes tail padding; even tile count for v7x."""
    ntiles = pl.cdiv(B, tb)
    if ntiles > 1 and ntiles % 2 == 1:
        ntiles += 1  # both v7x TensorCores get equal work
    TB = _round_up(pl.cdiv(B, ntiles), 8)  # sublane-aligned
    Bp = TB * ntiles
    return TB, Bp, ntiles


def mlp_shallow(x, w1, b1, w2, b2, *, tb=4096):
    """Fused forward pass.

    x : (B, 392) f32
    w1: (392, 470) f32   (PyTorch weight (470, 392) pre-transposed)
    b1: (1, 470)  or (470,) f32
    w2: (470, 2)  f32    (PyTorch weight (2, 470) pre-transposed)
    b2: (1, 2)    or (2,) f32
    returns (B, 2) f32
    """
    B = x.shape[0]
    TB, Bp, ntiles = _compute_tiling(B, tb)

    # bf16 inputs to the MXU layer (f32 accumulation preserved in-kernel).
    xb = x.astype(jnp.bfloat16)
    if Bp != B:
        xb = jnp.pad(xb, ((0, Bp - B), (0, 0)))  # zero rows; sliced off below

    # Layer-1 weights: zero-pad hidden 470 -> 512, cast to bf16.
    w1p = jnp.pad(w1, ((0, 0), (0, HID_PAD - HID_DIM))).astype(jnp.bfloat16)
    b1p = jnp.pad(b1.reshape(1, HID_DIM), ((0, 0), (0, HID_PAD - HID_DIM)))

    # Layer-2 weights stay f32 (VPU path) and are stored as (2, 512) so each
    # output column is a sublane-broadcast row inside the kernel.
    w2p = jnp.pad(w2, ((0, HID_PAD - HID_DIM), (0, 0))).T  # (2, 512) f32
    b2p = b2.reshape(1, OUT_DIM)

    out = pl.pallas_call(
        mlp_shallow_kernel,
        out_shape=jax.ShapeDtypeStruct((Bp, OUT_DIM), jnp.float32),
        grid_spec=pltpu.PrefetchScalarGridSpec(
            num_scalar_prefetch=0,
            grid=(ntiles,),
            in_specs=[
                pl.BlockSpec((TB, IN_DIM), lambda i: (i, 0)),         # x: tiled over batch
                pl.BlockSpec((IN_DIM, HID_PAD), lambda i: (0, 0)),    # W1: VMEM-resident
                pl.BlockSpec((1, HID_PAD), lambda i: (0, 0)),         # b1: VMEM-resident
                pl.BlockSpec((OUT_DIM, HID_PAD), lambda i: (0, 0)),   # W2: VMEM-resident
                pl.BlockSpec((1, OUT_DIM), lambda i: (0, 0)),         # b2: VMEM-resident
            ],
            out_specs=pl.BlockSpec((TB, OUT_DIM), lambda i: (i, 0)),
        ),
        compiler_params=pltpu.CompilerParams(
            dimension_semantics=("parallel",),  # megacore-shard batch tiles on v7x
        ),
    )(xb, w1p, b1p, w2p, b2p)
    return out[:B]


def init_params(key):
    """Deterministic init mimicking nn.Linear's U(-1/sqrt(fan_in), 1/sqrt(fan_in))."""
    k1, k2, k3, k4 = jax.random.split(key, 4)
    bound1 = 1.0 / jnp.sqrt(IN_DIM)
    bound2 = 1.0 / jnp.sqrt(HID_DIM)
    # PyTorch stores weight as (out, in); we keep the transposed (in, out) layout.
    w1 = jax.random.uniform(k1, (IN_DIM, HID_DIM), jnp.float32, -bound1, bound1)
    b1 = jax.random.uniform(k2, (1, HID_DIM), jnp.float32, -bound1, bound1)
    w2 = jax.random.uniform(k3, (HID_DIM, OUT_DIM), jnp.float32, -bound2, bound2)
    b2 = jax.random.uniform(k4, (1, OUT_DIM), jnp.float32, -bound2, bound2)
    return w1, b1, w2, b2


def mlp_shallow_ref(x, w1, b1, w2, b2, compute_dtype=jnp.float32):
    """Pure-JAX reference; compute_dtype=bfloat16 mirrors the kernel's layer-1 cast."""
    h1 = jnp.dot(x.astype(compute_dtype), w1.astype(compute_dtype),
                 preferred_element_type=jnp.float32)
    h1 = jnp.maximum(h1 + b1.reshape(1, HID_DIM), 0.0)
    return h1 @ w2 + b2.reshape(1, OUT_DIM)


if __name__ == "__main__":
    key = jax.random.PRNGKey(0)
    kx, kx2, kp = jax.random.split(key, 3)
    w1, b1, w2, b2 = init_params(kp)

    # Small-batch case (single tile).
    B = 8
    x = jax.random.normal(kx, (B, IN_DIM), jnp.float32)
    y = mlp_shallow(x, w1, b1, w2, b2)
    jax.block_until_ready(y)
    assert y.shape == (B, OUT_DIM)
    # Tight check vs a reference with the same bf16 input rounding.
    y_ref_bf16 = mlp_shallow_ref(x, w1, b1, w2, b2, compute_dtype=jnp.bfloat16)
    assert jnp.allclose(y, y_ref_bf16, atol=5e-4, rtol=1e-3), "mismatch vs bf16-matched ref (B=8)"
    # Coarse sanity check vs the exact f32 PyTorch-equivalent math.
    y_ref_f32 = mlp_shallow_ref(x, w1, b1, w2, b2)
    assert jnp.allclose(y, y_ref_f32, atol=1e-1), "mismatch vs f32 ref (B=8)"

    # Larger batch with a small tile override to exercise the multi-tile grid,
    # even-tile-count split, and tail padding (B=600 -> 6 tiles of 104 rows).
    B2 = 600
    x2 = jax.random.normal(kx2, (B2, IN_DIM), jnp.float32)
    y2 = mlp_shallow(x2, w1, b1, w2, b2, tb=128)
    jax.block_until_ready(y2)
    assert y2.shape == (B2, OUT_DIM)
    y2_ref_bf16 = mlp_shallow_ref(x2, w1, b1, w2, b2, compute_dtype=jnp.bfloat16)
    assert jnp.allclose(y2, y2_ref_bf16, atol=5e-4, rtol=1e-3), "mismatch vs bf16-matched ref (B=600)"
    y2_ref_f32 = mlp_shallow_ref(x2, w1, b1, w2, b2)
    assert jnp.allclose(y2, y2_ref_f32, atol=1e-1), "mismatch vs f32 ref (B=600)"

    # Default large-tile path on the same data (single 600-row tile).
    y3 = mlp_shallow(x2, w1, b1, w2, b2)
    jax.block_until_ready(y3)
    assert jnp.allclose(y3, y2_ref_bf16, atol=5e-4, rtol=1e-3), "mismatch vs bf16-matched ref (default tb)"

    print("KERNEL_OK")
</pallas_src>

<mosaic_0001>
module attributes {stable_mosaic.version = 11 : i64} {
  func.func @mlp_shallow_kernel(%arg0: i32, %arg1: memref<8x392xbf16, #tpu.memory_space<vmem>>, %arg2: memref<392x512xbf16, #tpu.memory_space<vmem>>, %arg3: memref<1x512xf32, #tpu.memory_space<vmem>>, %arg4: memref<2x512xf32, #tpu.memory_space<vmem>>, %arg5: memref<1x2xf32, #tpu.memory_space<vmem>>, %arg6: memref<8x2xf32, #tpu.memory_space<vmem>>) attributes {dimension_semantics = [#tpu.dimension_semantics<parallel>], iteration_bounds = array<i64: 1>, scalar_prefetch = 0 : i64, scratch_operands = 0 : i64, tpu.core_type = #tpu.core_type<tc>, window_params = [{transform_indices = @transform_0, window_bounds = array<i64: 8, 392>}, {pipeline_mode = #tpu.pipeline_mode<synchronous>, transform_indices = @transform_1, window_bounds = array<i64: 392, 512>}, {pipeline_mode = #tpu.pipeline_mode<synchronous>, transform_indices = @transform_2, window_bounds = array<i64: 1, 512>}, {pipeline_mode = #tpu.pipeline_mode<synchronous>, transform_indices = @transform_3, window_bounds = array<i64: 2, 512>}, {pipeline_mode = #tpu.pipeline_mode<synchronous>, transform_indices = @transform_4, window_bounds = array<i64: 1, 2>}, {transform_indices = @transform_5, window_bounds = array<i64: 8, 2>}]} {
    %c0 = arith.constant 0 : index
    %c0_0 = arith.constant 0 : index
    %0 = vector.load %arg1[%c0, %c0_0] : memref<8x392xbf16, #tpu.memory_space<vmem>>, vector<8x392xbf16>
    %c0_1 = arith.constant 0 : index
    %c0_2 = arith.constant 0 : index
    %1 = vector.load %arg2[%c0_1, %c0_2] : memref<392x512xbf16, #tpu.memory_space<vmem>>, vector<392x512xbf16>
    %cst = arith.constant dense<0.000000e+00> : vector<8x512xf32>
    %2 = tpu.matmul %0, %1, %cst {dimension_numbers = #tpu.dot_dimension_numbers<[1], [0], [0], [1], [0, 0, 1, 1], [], []>} : vector<8x392xbf16>, vector<392x512xbf16>, vector<8x512xf32> -> vector<8x512xf32>
    %c0_3 = arith.constant 0 : index
    %c0_4 = arith.constant 0 : index
    %3 = vector.load %arg3[%c0_3, %c0_4] : memref<1x512xf32, #tpu.memory_space<vmem>>, vector<1x512xf32>
    %4 = vector.broadcast %3 : vector<1x512xf32> to vector<8x512xf32>
    %5 = arith.addf %2, %4 : vector<8x512xf32>
    %cst_5 = arith.constant 0.000000e+00 : f32
    %6 = vector.broadcast %cst_5 : f32 to vector<8x512xf32>
    %7 = arith.maximumf %5, %6 : vector<8x512xf32>
    %c0_6 = arith.constant 0 : index
    %c0_7 = arith.constant 0 : index
    %8 = vector.load %arg4[%c0_6, %c0_7] : memref<2x512xf32, #tpu.memory_space<vmem>>, vector<2x512xf32>
    %9 = vector.extract_strided_slice %8 {offsets = [0, 0], sizes = [1, 512], strides = [1, 1]} : vector<2x512xf32> to vector<1x512xf32>
    %10 = vector.broadcast %9 : vector<1x512xf32> to vector<8x512xf32>
    %11 = arith.mulf %7, %10 : vector<8x512xf32>
    %cst_8 = arith.constant dense<0.000000e+00> : vector<8xf32>
    %12 = vector.multi_reduction <add>, %11, %cst_8 [1] : vector<8x512xf32> to vector<8xf32>
    %13 = vector.shape_cast %12 : vector<8xf32> to vector<8x1xf32>
    %14 = vector.extract_strided_slice %8 {offsets = [1, 0], sizes = [1, 512], strides = [1, 1]} : vector<2x512xf32> to vector<1x512xf32>
    %15 = vector.broadcast %14 : vector<1x512xf32> to vector<8x512xf32>
    %16 = arith.mulf %7, %15 : vector<8x512xf32>
    %cst_9 = arith.constant dense<0.000000e+00> : vector<8xf32>
    %17 = vector.multi_reduction <add>, %16, %cst_9 [1] : vector<8x512xf32> to vector<8xf32>
    %18 = vector.shape_cast %17 : vector<8xf32> to vector<8x1xf32>
    %19 = tpu.concatenate %13, %18 in 1 : vector<8x1xf32>, vector<8x1xf32> -> vector<8x2xf32>
    %c0_10 = arith.constant 0 : index
    %c0_11 = arith.constant 0 : index
    %20 = vector.load %arg5[%c0_10, %c0_11] : memref<1x2xf32, #tpu.memory_space<vmem>>, vector<1x2xf32>
    %21 = vector.broadcast %20 : vector<1x2xf32> to vector<8x2xf32>
    %22 = arith.addf %19, %21 : vector<8x2xf32>
    %c0_12 = arith.constant 0 : index
    %c0_13 = arith.constant 0 : index
    %23 = vector.load %arg6[%c0_12, %c0_13] : memref<8x2xf32, #tpu.memory_space<vmem>>, vector<8x2xf32>
    tpu.vector_store %arg6[%c0_12, %c0_13], %22 {strides = array<i32>} : memref<8x2xf32, #tpu.memory_space<vmem>>, vector<8x2xf32>,
    return
  }
  func.func @transform_0(%arg0: i32) -> (i32, i32) {
    %c0_i32 = arith.constant 0 : i32
    %c0_i32_0 = arith.constant 0 : i32
    return %arg0, %c0_i32 : i32, i32
  }
  func.func @transform_1(%arg0: i32) -> (i32, i32) {
    %c0_i32 = arith.constant 0 : i32
    %c0_i32_0 = arith.constant 0 : i32
    %c0_i32_1 = arith.constant 0 : i32
    return %c0_i32, %c0_i32_0 : i32, i32
  }
  func.func @transform_2(%arg0: i32) -> (i32, i32) {
    %c0_i32 = arith.constant 0 : i32
    %c0_i32_0 = arith.constant 0 : i32
    %c0_i32_1 = arith.constant 0 : i32
    return %c0_i32, %c0_i32_0 : i32, i32
  }
  func.func @transform_3(%arg0: i32) -> (i32, i32) {
    %c0_i32 = arith.constant 0 : i32
    %c0_i32_0 = arith.constant 0 : i32
    %c0_i32_1 = arith.constant 0 : i32
    return %c0_i32, %c0_i32_0 : i32, i32
  }
  func.func @transform_4(%arg0: i32) -> (i32, i32) {
    %c0_i32 = arith.constant 0 : i32
    %c0_i32_0 = arith.constant 0 : i32
    %c0_i32_1 = arith.constant 0 : i32
    return %c0_i32, %c0_i32_0 : i32, i32
  }
  func.func @transform_5(%arg0: i32) -> (i32, i32) {
    %c0_i32 = arith.constant 0 : i32
    %c0_i32_0 = arith.constant 0 : i32
    return %arg0, %c0_i32 : i32, i32
  }
}

</mosaic_0001>

<llo_original>
// kernel: tpu_custom_call.1
$region0: #{tpu_custom_call.1}
  #allocation0 [shape = 'u32[]', space=smem, size = 0x4, offset = 0x4, fixed_abs, tag = 'smem constant byte address 0x4 - core index']
  #allocation1 [shape = 'u32[144,128]{1,0:T(1,128)}', space=vmem, size = 0x12000, scoped, tag = 'internal scratch']
  %s0 = inlined_call_operand.hbm [shape: bf16[8,392], index: 0, kind: input, shape index: {}]
  %s1 = inlined_call_operand.hbm [shape: bf16[392,512], index: 1, kind: input, shape index: {}]
  %s2 = inlined_call_operand.hbm [shape: f32[1,512], index: 2, kind: input, shape index: {}]
  %s3 = inlined_call_operand.vmem [shape: f32[2,512], index: 3, kind: input, shape index: {}]
  %s4 = inlined_call_operand.vmem [shape: f32[1,2], index: 4, kind: input, shape index: {}]
  %s5 = inlined_call_operand.vmem [shape: f32[8,2], index: 5, kind: output, shape index: {}]
  %s6 = sld [smem:[#allocation0]]
  $region42: #{tpu_custom_call.1} parent=0
    _
  %s8 = ssub.s32 1, %s6
  %s9 = scalar_select 0, %s8, %s6
  $region1: #{tpu_custom_call.1} parent=0
    #allocation2 [shape = 'u8[8192]{0}', space=vmem, size = 0x2000, scoped, tag = 'input window, operand 0, single buffered']
    #allocation3 [shape = 's32[1]{0}', space=sflag, size = 0x4, scoped, tag = 'scoped memory for tpu_custom_call.1']
    #allocation4 [shape = 'u8[401408]{0}', space=vmem, size = 0x62000, scoped, tag = 'input window, operand 1, single buffered']
    #allocation5 [shape = 's32[1]{0}', space=sflag, size = 0x4, scoped, tag = 'scoped memory for tpu_custom_call.1']
    #allocation6 [shape = 'u8[2048]{0}', space=vmem, size = 0x800, scoped, tag = 'input window, operand 2, single buffered']
    %10 = vsyncpa [#allocation3], 0
    %11 = vsyncpa [#allocation5], 0
    // Predicated region
    $region2: #{tpu_custom_call.1} parent=1 // pred_check
      _
    $region3: #{tpu_custom_call.1} parent=1 // pred_check_branch
      %13 = sbr.rel (0) target = $region5
    $region4: #{tpu_custom_call.1} parent=1 // pred_region
      %s15 = ssub.s32 256, 256
      %16 = vsyncadd [#allocation3], %s15
      %s18 = sshll.u32 [#allocation2], 4
      %s19 = int_to_ptr.vmem [resolvable:$true] %s18
      %21 = dma.hbm_to_vmem [thread:$0]  %s0, 256, %s19, [#allocation3]
    $region5: #{tpu_custom_call.1} parent=1 // pred_fallthru
      _
    // Predicated region
    $region6: #{tpu_custom_call.1} parent=1 // pred_check
      _
    $region7: #{tpu_custom_call.1} parent=1 // pred_check_branch
      %23 = sbr.rel (0) target = $region9
    $region8: #{tpu_custom_call.1} parent=1 // pred_region
      %s25 = ssub.s32 12544, 12544
      %26 = vsyncadd [#allocation5], %s25
      %s27 = sshll.u32 [#allocation4], 4
      %s28 = int_to_ptr.vmem [resolvable:$true] %s27
      %33 = dma.hbm_to_vmem [thread:$0]  %s1, 12544, %s28, [#allocation5], 256, 256, 16
    $region9: #{tpu_custom_call.1} parent=1 // pred_fallthru
      _
    // Predicated region
    $region10: #{tpu_custom_call.1} parent=1 // pred_check
      _
    $region11: #{tpu_custom_call.1} parent=1 // pred_check_branch
      %35 = sbr.rel (0) target = $region13
    $region12: #{tpu_custom_call.1} parent=1 // pred_region
      %s37 = ssub.s32 64, 64
      %38 = vsyncadd [#allocation5], %s37
      %s40 = sshll.u32 [#allocation6], 4
      %s41 = int_to_ptr.vmem [resolvable:$true] %s40
      %43 = dma.hbm_to_vmem [thread:$0]  %s2, 64, %s41, [#allocation5]
    $region13: #{tpu_custom_call.1} parent=1 // pred_fallthru
      _
    // Predicated region
    $region14: #{tpu_custom_call.1} parent=1 // pred_check
      _
    $region15: #{tpu_custom_call.1} parent=1 // pred_check_branch
      %45 = sbr.rel (0) target = $region17
    $region16: #{tpu_custom_call.1} parent=1 // pred_region
      _
    $region17: #{tpu_custom_call.1} parent=1 // pred_fallthru
      _
    // Predicated region
    $region18: #{tpu_custom_call.1} parent=1 // pred_check
      _
    $region19: #{tpu_custom_call.1} parent=1 // pred_check_branch
      %47 = sbr.rel (0) target = $region21
    $region20: #{tpu_custom_call.1} parent=1 // pred_region
      _
    $region21: #{tpu_custom_call.1} parent=1 // pred_fallthru
      _
    // Predicated region
    $region22: #{tpu_custom_call.1} parent=1 // pred_check
      _
    $region23: #{tpu_custom_call.1} parent=1 // pred_check_branch
      %49 = sbr.rel (0) target = $region25
    $region24: #{tpu_custom_call.1} parent=1 // pred_region
      %50 = dma.done [#allocation3], 256
    $region25: #{tpu_custom_call.1} parent=1 // pred_fallthru
      _
    // Predicated region
    $region26: #{tpu_custom_call.1} parent=1 // pred_check
      _
    $region27: #{tpu_custom_call.1} parent=1 // pred_check_branch
      %52 = sbr.rel (0) target = $region29
    $region28: #{tpu_custom_call.1} parent=1 // pred_region
      %53 = dma.done [#allocation5], 12544
    $region29: #{tpu_custom_call.1} parent=1 // pred_fallthru
      _
    // Predicated region
    $region30: #{tpu_custom_call.1} parent=1 // pred_check
      _
    $region31: #{tpu_custom_call.1} parent=1 // pred_check_branch
      %55 = sbr.rel (0) target = $region33
    $region32: #{tpu_custom_call.1} parent=1 // pred_region
      %56 = dma.done [#allocation5], 64
    $region33: #{tpu_custom_call.1} parent=1 // pred_fallthru
      _
    %v58 = vld [vmem:[#allocation2] sm:$0xff]
    %v59 = vld [vmem:[#allocation2 + $0x8] sm:$0xff]
    %v60 = vld [vmem:[#allocation4] sm:$0xff]
    %v61 = vld [vmem:[#allocation4 + $0x8] sm:$0xff]
    %v62 = vld [vmem:[#allocation4 + $0x10] sm:$0xff]
    %v63 = vld [vmem:[#allocation4 + $0x18] sm:$0xff]
    %v64 = vld [vmem:[#allocation4 + $0x20] sm:$0xff]
    %v65 = vld [vmem:[#allocation4 + $0x28] sm:$0xff]
    %v66 = vld [vmem:[#allocation4 + $0x30] sm:$0xff]
    %v67 = vld [vmem:[#allocation4 + $0x38] sm:$0xff]
    %v68 = vld [vmem:[#allocation4 + $0x40] sm:$0xff]
    %v69 = vld [vmem:[#allocation4 + $0x48] sm:$0xff]
    %v70 = vld [vmem:[#allocation4 + $0x50] sm:$0xff]
    %v71 = vld [vmem:[#allocation4 + $0x58] sm:$0xff]
    %v72 = vld [vmem:[#allocation4 + $0x60] sm:$0xff]
    %v73 = vld [vmem:[#allocation4 + $0x68] sm:$0xff]
    %v74 = vld [vmem:[#allocation4 + $0x70] sm:$0xff]
    %v75 = vld [vmem:[#allocation4 + $0x78] sm:$0xff]
    %v76 = vld [vmem:[#allocation4 + $0x80] sm:$0xff]
    %v77 = vld [vmem:[#allocation4 + $0x88] sm:$0xff]
    %v78 = vld [vmem:[#allocation4 + $0x90] sm:$0xff]
    %v79 = vld [vmem:[#allocation4 + $0x98] sm:$0xff]
    %v80 = vld [vmem:[#allocation4 + $0xa0] sm:$0xff]
    %v81 = vld [vmem:[#allocation4 + $0xa8] sm:$0xff]
    %v82 = vld [vmem:[#allocation4 + $0xb0] sm:$0xff]
    %v83 = vld [vmem:[#allocation4 + $0xb8] sm:$0xff]
    %v84 = vld [vmem:[#allocation4 + $0xc0] sm:$0xff]
    %v85 = vld [vmem:[#allocation4 + $0xc8] sm:$0xff]
    %v86 = vld [vmem:[#allocation4 + $0xd0] sm:$0xff]
    %v87 = vld [vmem:[#allocation4 + $0xd8] sm:$0xff]
    %v88 = vld [vmem:[#allocation4 + $0xe0] sm:$0xff]
    %v89 = vld [vmem:[#allocation4 + $0xe8] sm:$0xff]
    %v90 = vld [vmem:[#allocation4 + $0xf0] sm:$0xff]
    %v91 = vld [vmem:[#allocation4 + $0xf8] sm:$0xff]
    %v92 = vld [vmem:[#allocation4 + $0x100] sm:$0xff]
    %v93 = vld [vmem:[#allocation4 + $0x108] sm:$0xff]
    %v94 = vld [vmem:[#allocation4 + $0x110] sm:$0xff]
    %v95 = vld [vmem:[#allocation4 + $0x118] sm:$0xff]
    %v96 = vld [vmem:[#allocation4 + $0x120] sm:$0xff]
    %v97 = vld [vmem:[#allocation4 + $0x128] sm:$0xff]
    %v98 = vld [vmem:[#allocation4 + $0x130] sm:$0xff]
    %v99 = vld [vmem:[#allocation4 + $0x138] sm:$0xff]
    %v100 = vld [vmem:[#allocation4 + $0x140] sm:$0xff]
    %v101 = vld [vmem:[#allocation4 + $0x148] sm:$0xff]
    %v102 = vld [vmem:[#allocation4 + $0x150] sm:$0xff]
    %v103 = vld [vmem:[#allocation4 + $0x158] sm:$0xff]
    %v104 = vld [vmem:[#allocation4 + $0x160] sm:$0xff]
    %v105 = vld [vmem:[#allocation4 + $0x168] sm:$0xff]
    %v106 = vld [vmem:[#allocation4 + $0x170] sm:$0xff]
    %v107 = vld [vmem:[#allocation4 + $0x178] sm:$0xff]
    %v108 = vld [vmem:[#allocation4 + $0x180] sm:$0xff]
    %v109 = vld [vmem:[#allocation4 + $0x188] sm:$0xff]
    %v110 = vld [vmem:[#allocation4 + $0x190] sm:$0xff]
    %v111 = vld [vmem:[#allocation4 + $0x198] sm:$0xff]
    %v112 = vld [vmem:[#allocation4 + $0x1a0] sm:$0xff]
    %v113 = vld [vmem:[#allocation4 + $0x1a8] sm:$0xff]
    %v114 = vld [vmem:[#allocation4 + $0x1b0] sm:$0xff]
    %v115 = vld [vmem:[#allocation4 + $0x1b8] sm:$0xff]
    %v116 = vld [vmem:[#allocation4 + $0x1c0] sm:$0xff]
    %v117 = vld [vmem:[#allocation4 + $0x1c8] sm:$0xff]
    %v118 = vld [vmem:[#allocation4 + $0x1d0] sm:$0xff]
    %v119 = vld [vmem:[#allocation4 + $0x1d8] sm:$0xff]
    %v120 = vld [vmem:[#allocation4 + $0x1e0] sm:$0xff]
    %v121 = vld [vmem:[#allocation4 + $0x1e8] sm:$0xff]
    %v122 = vld [vmem:[#allocation4 + $0x1f0] sm:$0xff]
    %v123 = vld [vmem:[#allocation4 + $0x1f8] sm:$0xff]
    %v124 = vld [vmem:[#allocation4 + $0x200] sm:$0xff]
    %v125 = vld [vmem:[#allocation4 + $0x208] sm:$0xff]
    %v126 = vld [vmem:[#allocation4 + $0x210] sm:$0xff]
    %v127 = vld [vmem:[#allocation4 + $0x218] sm:$0xff]
    %v128 = vld [vmem:[#allocation4 + $0x220] sm:$0xff]
    %v129 = vld [vmem:[#allocation4 + $0x228] sm:$0xff]
    %v130 = vld [vmem:[#allocation4 + $0x230] sm:$0xff]
    %v131 = vld [vmem:[#allocation4 + $0x238] sm:$0xff]
    %v132 = vld [vmem:[#allocation4 + $0x240] sm:$0xff]
    %v133 = vld [vmem:[#allocation4 + $0x248] sm:$0xff]
    %v134 = vld [vmem:[#allocation4 + $0x250] sm:$0xff]
    %v135 = vld [vmem:[#allocation4 + $0x258] sm:$0xff]
    %v136 = vld [vmem:[#allocation4 + $0x260] sm:$0xff]
    %v137 = vld [vmem:[#allocation4 + $0x268] sm:$0xff]
    %v138 = vld [vmem:[#allocation4 + $0x270] sm:$0xff]
    %v139 = vld [vmem:[#allocation4 + $0x278] sm:$0xff]
    %v140 = vld [vmem:[#allocation4 + $0x280] sm:$0xff]
    %v141 = vld [vmem:[#allocation4 + $0x288] sm:$0xff]
    %v142 = vld [vmem:[#allocation4 + $0x290] sm:$0xff]
    %v143 = vld [vmem:[#allocation4 + $0x298] sm:$0xff]
    %v144 = vld [vmem:[#allocation4 + $0x2a0] sm:$0xff]
    %v145 = vld [vmem:[#allocation4 + $0x2a8] sm:$0xff]
    %v146 = vld [vmem:[#allocation4 + $0x2b0] sm:$0xff]
    %v147 = vld [vmem:[#allocation4 + $0x2b8] sm:$0xff]
    %v148 = vld [vmem:[#allocation4 + $0x2c0] sm:$0xff]
    %v149 = vld [vmem:[#allocation4 + $0x2c8] sm:$0xff]
    %v150 = vld [vmem:[#allocation4 + $0x2d0] sm:$0xff]
    %v151 = vld [vmem:[#allocation4 + $0x2d8] sm:$0xff]
    %v152 = vld [vmem:[#allocation4 + $0x2e0] sm:$0xff]
    %v153 = vld [vmem:[#allocation4 + $0x2e8] sm:$0xff]
    %v154 = vld [vmem:[#allocation4 + $0x2f0] sm:$0xff]
    %v155 = vld [vmem:[#allocation4 + $0x2f8] sm:$0xff]
    %v156 = vld [vmem:[#allocation4 + $0x300] sm:$0xff]
    %v157 = vld [vmem:[#allocation4 + $0x308] sm:$0xff]
    %v158 = vld [vmem:[#allocation6] sm:$0xf]
    %v160 = vlaneseq
    %v161 = vshrl.u32 %v160, 7
    %v162 = vsub.s32 0, %v161
    %v163 = vrot.slane %v158, %v162
    %v164 = vlaneseq
    %v165 = vshrl.u32 %v164, 7
    %v166 = vsub.s32 1, %v165
    %v167 = vrot.slane %v158, %v166
    %v168 = vlaneseq
    %v169 = vshrl.u32 %v168, 7
    %v170 = vsub.s32 2, %v169
    %v171 = vrot.slane %v158, %v170
    %v172 = vlaneseq
    %v173 = vshrl.u32 %v172, 7
    %v174 = vsub.s32 3, %v173
    %v175 = vrot.slane %v158, %v174
    %v182 = vunpack.c.l.b16 %v58
    %v183 = vunpack.c.h.b16 %v58
    %v184 = vunpack.c.l.b16 %v59
    %v185 = vunpack.c.h.b16 %v59
    %v186 = vpack.c.b16 %v182, %v182
    %v187 = vpack.c.b16 %v183, %v183
    %v188 = vpack.c.b16 %v184, %v184
    %v189 = vpack.c.b16 %v185, %v185
    %v291 = vunpack.c.l.b16 %v60
    %v292 = vunpack.c.h.b16 %v60
    %v293 = vunpack.c.l.b16 %v61
    %v294 = vunpack.c.h.b16 %v61
    %v295 = vunpack.c.l.b16 %v62
    %v296 = vunpack.c.h.b16 %v62
    %v297 = vunpack.c.l.b16 %v63
    %v298 = vunpack.c.h.b16 %v63
    %v299 = vunpack.c.l.b16 %v64
    %v300 = vunpack.c.h.b16 %v64
    %v301 = vunpack.c.l.b16 %v65
    %v302 = vunpack.c.h.b16 %v65
    %v303 = vunpack.c.l.b16 %v66
    %v304 = vunpack.c.h.b16 %v66
    %v305 = vunpack.c.l.b16 %v67
    %v306 = vunpack.c.h.b16 %v67
    %v307 = vunpack.c.l.b16 %v68
    %v308 = vunpack.c.h.b16 %v68
    %v309 = vunpack.c.l.b16 %v69
    %v310 = vunpack.c.h.b16 %v69
    %v311 = vunpack.c.l.b16 %v70
    %v312 = vunpack.c.h.b16 %v70
    %v313 = vunpack.c.l.b16 %v71
    %v314 = vunpack.c.h.b16 %v71
    %v315 = vunpack.c.l.b16 %v72
    %v316 = vunpack.c.h.b16 %v72
    %v317 = vunpack.c.l.b16 %v73
    %v318 = vunpack.c.h.b16 %v73
    %v319 = vunpack.c.l.b16 %v74
    %v320 = vunpack.c.h.b16 %v74
    %v321 = vunpack.c.l.b16 %v75
    %v322 = vunpack.c.h.b16 %v75
    %v323 = vunpack.c.l.b16 %v76
    %v324 = vunpack.c.h.b16 %v76
    %v325 = vunpack.c.l.b16 %v77
    %v326 = vunpack.c.h.b16 %v77
    %v327 = vunpack.c.l.b16 %v78
    %v328 = vunpack.c.h.b16 %v78
    %v329 = vunpack.c.l.b16 %v79
    %v330 = vunpack.c.h.b16 %v79
    %v331 = vunpack.c.l.b16 %v80
    %v332 = vunpack.c.h.b16 %v80
    %v333 = vunpack.c.l.b16 %v81
    %v334 = vunpack.c.h.b16 %v81
    %v335 = vunpack.c.l.b16 %v82
    %v336 = vunpack.c.h.b16 %v82
    %v337 = vunpack.c.l.b16 %v83
    %v338 = vunpack.c.h.b16 %v83
    %v339 = vunpack.c.l.b16 %v84
    %v340 = vunpack.c.h.b16 %v84
    %v341 = vunpack.c.l.b16 %v85
    %v342 = vunpack.c.h.b16 %v85
    %v343 = vunpack.c.l.b16 %v86
    %v344 = vunpack.c.h.b16 %v86
    %v345 = vunpack.c.l.b16 %v87
    %v346 = vunpack.c.h.b16 %v87
    %v347 = vunpack.c.l.b16 %v88
    %v348 = vunpack.c.h.b16 %v88
    %v349 = vunpack.c.l.b16 %v89
    %v350 = vunpack.c.h.b16 %v89
    %v351 = vunpack.c.l.b16 %v90
    %v352 = vunpack.c.h.b16 %v90
    %v353 = vunpack.c.l.b16 %v91
    %v354 = vunpack.c.h.b16 %v91
    %v355 = vunpack.c.l.b16 %v92
    %v356 = vunpack.c.h.b16 %v92
    %v357 = vunpack.c.l.b16 %v93
    %v358 = vunpack.c.h.b16 %v93
    %v359 = vunpack.c.l.b16 %v94
    %v360 = vunpack.c.h.b16 %v94
    %v361 = vunpack.c.l.b16 %v95
    %v362 = vunpack.c.h.b16 %v95
    %v363 = vunpack.c.l.b16 %v96
    %v364 = vunpack.c.h.b16 %v96
    %v365 = vunpack.c.l.b16 %v97
    %v366 = vunpack.c.h.b16 %v97
    %v367 = vunpack.c.l.b16 %v98
    %v368 = vunpack.c.h.b16 %v98
    %v369 = vunpack.c.l.b16 %v99
    %v370 = vunpack.c.h.b16 %v99
    %v371 = vunpack.c.l.b16 %v100
    %v372 = vunpack.c.h.b16 %v100
    %v373 = vunpack.c.l.b16 %v101
    %v374 = vunpack.c.h.b16 %v101
    %v375 = vunpack.c.l.b16 %v102
    %v376 = vunpack.c.h.b16 %v102
    %v377 = vunpack.c.l.b16 %v103
    %v378 = vunpack.c.h.b16 %v103
    %v379 = vunpack.c.l.b16 %v104
    %v380 = vunpack.c.h.b16 %v104
    %v381 = vunpack.c.l.b16 %v105
    %v382 = vunpack.c.h.b16 %v105
    %v383 = vunpack.c.l.b16 %v106
    %v384 = vunpack.c.h.b16 %v106
    %v385 = vunpack.c.l.b16 %v107
    %v386 = vunpack.c.h.b16 %v107
    %v387 = vunpack.c.l.b16 %v108
    %v388 = vunpack.c.h.b16 %v108
    %v389 = vunpack.c.l.b16 %v109
    %v390 = vunpack.c.h.b16 %v109
    %v391 = vunpack.c.l.b16 %v110
    %v392 = vunpack.c.h.b16 %v110
    %v393 = vunpack.c.l.b16 %v111
    %v394 = vunpack.c.h.b16 %v111
    %v395 = vunpack.c.l.b16 %v112
    %v396 = vunpack.c.h.b16 %v112
    %v397 = vunpack.c.l.b16 %v113
    %v398 = vunpack.c.h.b16 %v113
    %v399 = vunpack.c.l.b16 %v114
    %v400 = vunpack.c.h.b16 %v114
    %v401 = vunpack.c.l.b16 %v115
    %v402 = vunpack.c.h.b16 %v115
    %v403 = vunpack.c.l.b16 %v116
    %v404 = vunpack.c.h.b16 %v116
    %v405 = vunpack.c.l.b16 %v117
    %v406 = vunpack.c.h.b16 %v117
    %v407 = vunpack.c.l.b16 %v118
    %v408 = vunpack.c.h.b16 %v118
    %v409 = vunpack.c.l.b16 %v119
    %v410 = vunpack.c.h.b16 %v119
    %v411 = vunpack.c.l.b16 %v120
    %v412 = vunpack.c.h.b16 %v120
    %v413 = vunpack.c.l.b16 %v121
    %v414 = vunpack.c.h.b16 %v121
    %v415 = vunpack.c.l.b16 %v122
    %v416 = vunpack.c.h.b16 %v122
    %v417 = vunpack.c.l.b16 %v123
    %v418 = vunpack.c.h.b16 %v123
    %v419 = vunpack.c.l.b16 %v124
    %v420 = vunpack.c.h.b16 %v124
    %v421 = vunpack.c.l.b16 %v125
    %v422 = vunpack.c.h.b16 %v125
    %v423 = vunpack.c.l.b16 %v126
    %v424 = vunpack.c.h.b16 %v126
    %v425 = vunpack.c.l.b16 %v127
    %v426 = vunpack.c.h.b16 %v127
    %v427 = vunpack.c.l.b16 %v128
    %v428 = vunpack.c.h.b16 %v128
    %v429 = vunpack.c.l.b16 %v129
    %v430 = vunpack.c.h.b16 %v129
    %v431 = vunpack.c.l.b16 %v130
    %v432 = vunpack.c.h.b16 %v130
    %v433 = vunpack.c.l.b16 %v131
    %v434 = vunpack.c.h.b16 %v131
    %v435 = vunpack.c.l.b16 %v132
    %v436 = vunpack.c.h.b16 %v132
    %v437 = vunpack.c.l.b16 %v133
    %v438 = vunpack.c.h.b16 %v133
    %v439 = vunpack.c.l.b16 %v134
    %v440 = vunpack.c.h.b16 %v134
    %v441 = vunpack.c.l.b16 %v135
    %v442 = vunpack.c.h.b16 %v135
    %v443 = vunpack.c.l.b16 %v136
    %v444 = vunpack.c.h.b16 %v136
    %v445 = vunpack.c.l.b16 %v137
    %v446 = vunpack.c.h.b16 %v137
    %v447 = vunpack.c.l.b16 %v138
    %v448 = vunpack.c.h.b16 %v138
    %v449 = vunpack.c.l.b16 %v139
    %v450 = vunpack.c.h.b16 %v139
    %v451 = vunpack.c.l.b16 %v140
    %v452 = vunpack.c.h.b16 %v140
    %v453 = vunpack.c.l.b16 %v141
    %v454 = vunpack.c.h.b16 %v141
    %v455 = vunpack.c.l.b16 %v142
    %v456 = vunpack.c.h.b16 %v142
    %v457 = vunpack.c.l.b16 %v143
    %v458 = vunpack.c.h.b16 %v143
    %v459 = vunpack.c.l.b16 %v144
    %v460 = vunpack.c.h.b16 %v144
    %v461 = vunpack.c.l.b16 %v145
    %v462 = vunpack.c.h.b16 %v145
    %v463 = vunpack.c.l.b16 %v146
    %v464 = vunpack.c.h.b16 %v146
    %v465 = vunpack.c.l.b16 %v147
    %v466 = vunpack.c.h.b16 %v147
    %v467 = vunpack.c.l.b16 %v148
    %v468 = vunpack.c.h.b16 %v148
    %v469 = vunpack.c.l.b16 %v149
    %v470 = vunpack.c.h.b16 %v149
    %v471 = vunpack.c.l.b16 %v150
    %v472 = vunpack.c.h.b16 %v150
    %v473 = vunpack.c.l.b16 %v151
    %v474 = vunpack.c.h.b16 %v151
    %v475 = vunpack.c.l.b16 %v152
    %v476 = vunpack.c.h.b16 %v152
    %v477 = vunpack.c.l.b16 %v153
    %v478 = vunpack.c.h.b16 %v153
    %v479 = vunpack.c.l.b16 %v154
    %v480 = vunpack.c.h.b16 %v154
    %v481 = vunpack.c.l.b16 %v155
    %v482 = vunpack.c.h.b16 %v155
    %v483 = vunpack.c.l.b16 %v156
    %v484 = vunpack.c.h.b16 %v156
    %v485 = vunpack.c.l.b16 %v157
    %v486 = vunpack.c.h.b16 %v157
    %v487 = vpack.c.b16 %v295, %v291
    %v488 = vpack.c.b16 %v296, %v292
    %v489 = vpack.c.b16 %v297, %v293
    %v490 = vpack.c.b16 %v298, %v294
    %v491 = vpack.c.b16 %v303, %v299
    %v492 = vpack.c.b16 %v304, %v300
    %v493 = vpack.c.b16 %v305, %v301
    %v494 = vpack.c.b16 %v306, %v302
    %v495 = vpack.c.b16 %v311, %v307
    %v496 = vpack.c.b16 %v312, %v308
    %v497 = vpack.c.b16 %v313, %v309
    %v498 = vpack.c.b16 %v314, %v310
    %v499 = vpack.c.b16 %v319, %v315
    %v500 = vpack.c.b16 %v320, %v316
    %v501 = vpack.c.b16 %v321, %v317
    %v502 = vpack.c.b16 %v322, %v318
    %v503 = vpack.c.b16 %v327, %v323
    %v504 = vpack.c.b16 %v328, %v324
    %v505 = vpack.c.b16 %v329, %v325
    %v506 = vpack.c.b16 %v330, %v326
    %v507 = vpack.c.b16 %v335, %v331
    %v508 = vpack.c.b16 %v336, %v332
    %v509 = vpack.c.b16 %v337, %v333
    %v510 = vpack.c.b16 %v338, %v334
    %v511 = vpack.c.b16 %v343, %v339
    %v512 = vpack.c.b16 %v344, %v340
    %v513 = vpack.c.b16 %v345, %v341
    %v514 = vpack.c.b16 %v346, %v342
    %v515 = vpack.c.b16 %v351, %v347
    %v516 = vpack.c.b16 %v352, %v348
    %v517 = vpack.c.b16 %v353, %v349
    %v518 = vpack.c.b16 %v354, %v350
    %v519 = vpack.c.b16 %v359, %v355
    %v520 = vpack.c.b16 %v360, %v356
    %v521 = vpack.c.b16 %v361, %v357
    %v522 = vpack.c.b16 %v362, %v358
    %v523 = vpack.c.b16 %v367, %v363
    %v524 = vpack.c.b16 %v368, %v364
    %v525 = vpack.c.b16 %v369, %v365
    %v526 = vpack.c.b16 %v370, %v366
    %v527 = vpack.c.b16 %v375, %v371
    %v528 = vpack.c.b16 %v376, %v372
    %v529 = vpack.c.b16 %v377, %v373
    %v530 = vpack.c.b16 %v378, %v374
    %v531 = vpack.c.b16 %v383, %v379
    %v532 = vpack.c.b16 %v384, %v380
    %v533 = vpack.c.b16 %v385, %v381
    %v534 = vpack.c.b16 %v386, %v382
    %v535 = vpack.c.b16 %v391, %v387
    %v536 = vpack.c.b16 %v392, %v388
    %v537 = vpack.c.b16 %v393, %v389
    %v538 = vpack.c.b16 %v394, %v390
    %v539 = vpack.c.b16 %v399, %v395
    %v540 = vpack.c.b16 %v400, %v396
    %v541 = vpack.c.b16 %v401, %v397
    %v542 = vpack.c.b16 %v402, %v398
    %v543 = vpack.c.b16 %v407, %v403
    %v544 = vpack.c.b16 %v408, %v404
    %v545 = vpack.c.b16 %v409, %v405
    %v546 = vpack.c.b16 %v410, %v406
    %v547 = vpack.c.b16 %v415, %v411
    %v548 = vpack.c.b16 %v416, %v412
    %v549 = vpack.c.b16 %v417, %v413
    %v550 = vpack.c.b16 %v418, %v414
    %v551 = vpack.c.b16 %v423, %v419
    %v552 = vpack.c.b16 %v424, %v420
    %v553 = vpack.c.b16 %v425, %v421
    %v554 = vpack.c.b16 %v426, %v422
    %v555 = vpack.c.b16 %v431, %v427
    %v556 = vpack.c.b16 %v432, %v428
    %v557 = vpack.c.b16 %v433, %v429
    %v558 = vpack.c.b16 %v434, %v430
    %v559 = vpack.c.b16 %v439, %v435
    %v560 = vpack.c.b16 %v440, %v436
    %v561 = vpack.c.b16 %v441, %v437
    %v562 = vpack.c.b16 %v442, %v438
    %v563 = vpack.c.b16 %v447, %v443
    %v564 = vpack.c.b16 %v448, %v444
    %v565 = vpack.c.b16 %v449, %v445
    %v566 = vpack.c.b16 %v450, %v446
    %v567 = vpack.c.b16 %v455, %v451
    %v568 = vpack.c.b16 %v456, %v452
    %v569 = vpack.c.b16 %v457, %v453
    %v570 = vpack.c.b16 %v458, %v454
    %v571 = vpack.c.b16 %v463, %v459
    %v572 = vpack.c.b16 %v464, %v460
    %v573 = vpack.c.b16 %v465, %v461
    %v574 = vpack.c.b16 %v466, %v462
    %v575 = vpack.c.b16 %v471, %v467
    %v576 = vpack.c.b16 %v472, %v468
    %v577 = vpack.c.b16 %v473, %v469
    %v578 = vpack.c.b16 %v474, %v470
    %v579 = vpack.c.b16 %v479, %v475
    %v580 = vpack.c.b16 %v480, %v476
    %v581 = vpack.c.b16 %v481, %v477
    %v582 = vpack.c.b16 %v482, %v478
    %v583 = vpack.c.b16 %v483, %v483
    %v584 = vpack.c.b16 %v484, %v484
    %v585 = vpack.c.b16 %v485, %v485
    %v586 = vpack.c.b16 %v486, %v486
    %vm683 = vcmask 64512
    %v685 = vsel %vm683, %v189, 0
    %vm687 = vcmask 1043456
    %v689 = vsel %vm687, %v583, 0
    %v692 = vsel %vm687, %v584, 0
    %v695 = vsel %vm687, %v585, 0
    %v698 = vsel %vm687, %v586, 0
    %700 = vmatprep.subr.bf16.mxu0 %v488
    %701 = vmatpush1.bf16.msra.mxu0 %v487
    %702 = vmatprep.subr.bf16.mxu0 %v492
    %703 = vmatpush1.bf16.msra.mxu0 %v491
    %704 = vmatprep.subr.bf16.mxu0 %v496
    %705 = vmatpush1.bf16.msra.mxu0 %v495
    %706 = vmatprep.subr.bf16.mxu0 %v500
    %707 = vmatpush1.bf16.msra.mxu0 %v499
    %708 = vmatprep.subr.bf16.mxu0 %v504
    %709 = vmatpush1.bf16.msra.mxu0 %v503
    %710 = vmatprep.subr.bf16.mxu0 %v508
    %711 = vmatpush1.bf16.msra.mxu0 %v507
    %712 = vmatprep.subr.bf16.mxu0 %v512
    %713 = vmatpush1.bf16.msra.mxu0 %v511
    %714 = vmatprep.subr.bf16.mxu0 %v516
    %715 = vmatpush1.bf16.msra.mxu0 %v515
    %716 = vmatprep.subr.bf16.mxu0 %v520
    %717 = vmatpush1.bf16.msra.mxu0 %v519
    %718 = vmatprep.subr.bf16.mxu0 %v524
    %719 = vmatpush1.bf16.msra.mxu0 %v523
    %720 = vmatprep.subr.bf16.mxu0 %v528
    %721 = vmatpush1.bf16.msra.mxu0 %v527
    %722 = vmatprep.subr.bf16.mxu0 %v532
    %723 = vmatpush1.bf16.msra.mxu0 %v531
    %724 = vmatprep.subr.bf16.mxu0 %v536
    %725 = vmatpush1.bf16.msra.mxu0 %v535
    %726 = vmatprep.subr.bf16.mxu0 %v540
    %727 = vmatpush1.bf16.msra.mxu0 %v539
    %728 = vmatprep.subr.bf16.mxu0 %v544
    %729 = vmatpush1.bf16.msra.mxu0 %v543
    %730 = vmatprep.subr.bf16.mxu0 %v548
    %731 = vmatpush1.bf16.msra.mxu0 %v547
    %732 = vmatprep.mubr.bf16.mxu0 %v187
    %733 = vmatmul.mubr.bf16.gmra.mrb[0].mxu0 %v186
    %v734 = vpop.f32.mrb[0].mxu0
    %v735 = vadd.f32 %v163, %v734
    %v736 = vpop.f32.mrb[0].mxu0
    %v737 = vadd.f32 %v167, %v736
    %v738 = vpop.f32.mrb[0].mxu0
    %v739 = vpop.f32.mrb[0].mxu0
    %740 = vdwg.mxu0
    %741 = vmatprep.subr.bf16.mxu0 %v552
    %742 = vmatpush1.bf16.msra.mxu0 %v551
    %743 = vmatprep.subr.bf16.mxu0 %v556
    %744 = vmatpush1.bf16.msra.mxu0 %v555
    %745 = vmatprep.subr.bf16.mxu0 %v560
    %746 = vmatpush1.bf16.msra.mxu0 %v559
    %747 = vmatprep.subr.bf16.mxu0 %v564
    %748 = vmatpush1.bf16.msra.mxu0 %v563
    %749 = vmatprep.subr.bf16.mxu0 %v568
    %750 = vmatpush1.bf16.msra.mxu0 %v567
    %751 = vmatprep.subr.bf16.mxu0 %v572
    %752 = vmatpush1.bf16.msra.mxu0 %v571
    %753 = vmatprep.subr.bf16.mxu0 %v576
    %754 = vmatpush1.bf16.msra.mxu0 %v575
    %755 = vmatprep.subr.bf16.mxu0 %v580
    %756 = vmatpush1.bf16.msra.mxu0 %v579
    %757 = vmatprep.subr.bf16.mxu0 %v692
    %758 = vmatpush1.bf16.msra.mxu0 %v689
    %759 = vmatprep.subr.bf16.mxu0 0
    %760 = vmatpush1.bf16.msra.mxu0 0
    %761 = vmatprep.subr.bf16.mxu0 0
    %762 = vmatpush1.bf16.msra.mxu0 0
    %763 = vmatprep.subr.bf16.mxu0 0
    %764 = vmatpush1.bf16.msra.mxu0 0
    %765 = vmatprep.subr.bf16.mxu0 0
    %766 = vmatpush1.bf16.msra.mxu0 0
    %767 = vmatprep.subr.bf16.mxu0 0
    %768 = vmatpush1.bf16.msra.mxu0 0
    %769 = vmatprep.subr.bf16.mxu0 0
    %770 = vmatpush1.bf16.msra.mxu0 0
    %771 = vmatprep.subr.bf16.mxu0 0
    %772 = vmatpush1.bf16.msra.mxu0 0
    %773 = vmatprep.mubr.bf16.mxu0 %v685
    %774 = vmatmul.mubr.bf16.gmra.mrb[0].mxu0 %v188
    %v775 = vpop.f32.mrb[0].mxu0
    %v776 = vadd.f32 %v735, %v775
    %v777 = vpop.f32.mrb[0].mxu0
    %v778 = vadd.f32 %v737, %v777
    %v779 = vpop.f32.mrb[0].mxu0
    %v780 = vpop.f32.mrb[0].mxu0
    %781 = vdwg.mxu0
    %782 = vmatprep.subr.bf16.mxu0 %v490
    %783 = vmatpush1.bf16.msra.mxu0 %v489
    %784 = vmatprep.subr.bf16.mxu0 %v494
    %785 = vmatpush1.bf16.msra.mxu0 %v493
    %786 = vmatprep.subr.bf16.mxu0 %v498
    %787 = vmatpush1.bf16.msra.mxu0 %v497
    %788 = vmatprep.subr.bf16.mxu0 %v502
    %789 = vmatpush1.bf16.msra.mxu0 %v501
    %790 = vmatprep.subr.bf16.mxu0 %v506
    %791 = vmatpush1.bf16.msra.mxu0 %v505
    %792 = vmatprep.subr.bf16.mxu0 %v510
    %793 = vmatpush1.bf16.msra.mxu0 %v509
    %794 = vmatprep.subr.bf16.mxu0 %v514
    %795 = vmatpush1.bf16.msra.mxu0 %v513
    %796 = vmatprep.subr.bf16.mxu0 %v518
    %797 = vmatpush1.bf16.msra.mxu0 %v517
    %798 = vmatprep.subr.bf16.mxu0 %v522
    %799 = vmatpush1.bf16.msra.mxu0 %v521
    %800 = vmatprep.subr.bf16.mxu0 %v526
    %801 = vmatpush1.bf16.msra.mxu0 %v525
    %802 = vmatprep.subr.bf16.mxu0 %v530
    %803 = vmatpush1.bf16.msra.mxu0 %v529
    %804 = vmatprep.subr.bf16.mxu0 %v534
    %805 = vmatpush1.bf16.msra.mxu0 %v533
    %806 = vmatprep.subr.bf16.mxu0 %v538
    %807 = vmatpush1.bf16.msra.mxu0 %v537
    %808 = vmatprep.subr.bf16.mxu0 %v542
    %809 = vmatpush1.bf16.msra.mxu0 %v541
    %810 = vmatprep.subr.bf16.mxu0 %v546
    %811 = vmatpush1.bf16.msra.mxu0 %v545
    %812 = vmatprep.subr.bf16.mxu0 %v550
    %813 = vmatpush1.bf16.msra.mxu0 %v549
    %814 = vmatprep.mubr.bf16.mxu0 %v187
    %815 = vmatmul.mubr.bf16.gmra.mrb[0].mxu0 %v186
    %v816 = vpop.f32.mrb[0].mxu0
    %v817 = vadd.f32 %v171, %v816
    %v818 = vpop.f32.mrb[0].mxu0
    %v819 = vadd.f32 %v175, %v818
    %v820 = vpop.f32.mrb[0].mxu0
    %v821 = vpop.f32.mrb[0].mxu0
    %822 = vdwg.mxu0
    %823 = vmatprep.subr.bf16.mxu0 %v554
    %824 = vmatpush1.bf16.msra.mxu0 %v553
    %825 = vmatprep.subr.bf16.mxu0 %v558
    %826 = vmatpush1.bf16.msra.mxu0 %v557
    %827 = vmatprep.subr.bf16.mxu0 %v562
    %828 = vmatpush1.bf16.msra.mxu0 %v561
    %829 = vmatprep.subr.bf16.mxu0 %v566
    %830 = vmatpush1.bf16.msra.mxu0 %v565
    %831 = vmatprep.subr.bf16.mxu0 %v570
    %832 = vmatpush1.bf16.msra.mxu0 %v569
    %833 = vmatprep.subr.bf16.mxu0 %v574
    %834 = vmatpush1.bf16.msra.mxu0 %v573
    %835 = vmatprep.subr.bf16.mxu0 %v578
    %836 = vmatpush1.bf16.msra.mxu0 %v577
    %837 = vmatprep.subr.bf16.mxu0 %v582
    %838 = vmatpush1.bf16.msra.mxu0 %v581
    %839 = vmatprep.subr.bf16.mxu0 %v698
    %840 = vmatpush1.bf16.msra.mxu0 %v695
    %841 = vmatprep.subr.bf16.mxu0 0
    %842 = vmatpush1.bf16.msra.mxu0 0
    %843 = vmatprep.subr.bf16.mxu0 0
    %844 = vmatpush1.bf16.msra.mxu0 0
    %845 = vmatprep.subr.bf16.mxu0 0
    %846 = vmatpush1.bf16.msra.mxu0 0
    %847 = vmatprep.subr.bf16.mxu0 0
    %848 = vmatpush1.bf16.msra.mxu0 0
    %849 = vmatprep.subr.bf16.mxu0 0
    %850 = vmatpush1.bf16.msra.mxu0 0
    %851 = vmatprep.subr.bf16.mxu0 0
    %852 = vmatpush1.bf16.msra.mxu0 0
    %853 = vmatprep.subr.bf16.mxu0 0
    %854 = vmatpush1.bf16.msra.mxu0 0
    %855 = vmatprep.mubr.bf16.mxu0 %v685
    %856 = vmatmul.mubr.bf16.gmra.mrb[0].mxu0 %v188
    %v857 = vpop.f32.mrb[0].mxu0
    %v858 = vadd.f32 %v817, %v857
    %v859 = vpop.f32.mrb[0].mxu0
    %v860 = vadd.f32 %v819, %v859
    %v861 = vpop.f32.mrb[0].mxu0
    %v862 = vpop.f32.mrb[0].mxu0
    %863 = vdwg.mxu0
    %v864 = vmax.f32 %v776, 0.0
    %v865 = vmax.f32 %v778, 0.0
    %v866 = vmax.f32 %v858, 0.0
    %v867 = vmax.f32 %v860, 0.0
    %v868 = vld [vmem:[%s3] sm:$0xff]
    %v870 = vlaneseq
    %v871 = vshrl.u32 %v870, 7
    %v872 = vsub.s32 0, %v871
    %v873 = vrot.slane %v868, %v872
    %v874 = vlaneseq
    %v875 = vshrl.u32 %v874, 7
    %v876 = vsub.s32 2, %v875
    %v877 = vrot.slane %v868, %v876
    %v878 = vlaneseq
    %v879 = vshrl.u32 %v878, 7
    %v880 = vsub.s32 4, %v879
    %v881 = vrot.slane %v868, %v880
    %v882 = vlaneseq
    %v883 = vshrl.u32 %v882, 7
    %v884 = vsub.s32 6, %v883
    %v885 = vrot.slane %v868, %v884
    %v890 = vlaneseq
    %v891 = vshrl.u32 %v890, 7
    %v892 = vsub.s32 0, %v891
    %v893 = vrot.slane %v873, %v892
    %v894 = vlaneseq
    %v895 = vshrl.u32 %v894, 7
    %v896 = vsub.s32 0, %v895
    %v897 = vrot.slane %v877, %v896
    %v898 = vlaneseq
    %v899 = vshrl.u32 %v898, 7
    %v900 = vsub.s32 0, %v899
    %v901 = vrot.slane %v881, %v900
    %v902 = vlaneseq
    %v903 = vshrl.u32 %v902, 7
    %v904 = vsub.s32 0, %v903
    %v905 = vrot.slane %v885, %v904
    %v906 = vmul.f32 %v864, %v893
    %v907 = vmul.f32 %v865, %v897
    %v908 = vmul.f32 %v866, %v901
    %v909 = vmul.f32 %v867, %v905
    %v910 = vadd.f32 %v906, %v907
    %v911 = vadd.f32 %v910, %v908
    %v912 = vadd.f32 %v911, %v909
    %913 = vadd.xlane.f32.xlu0 %v912
    %v914 = vpop.xlane.xlu0 %913
    %v915 = vlaneseq
    %v916 = vshrl.u32 %v915, 7
    %v917 = vsub.s32 1, %v916
    %v918 = vrot.slane %v868, %v917
    %v919 = vlaneseq
    %v920 = vshrl.u32 %v919, 7
    %v921 = vsub.s32 3, %v920
    %v922 = vrot.slane %v868, %v921
    %v923 = vlaneseq
    %v924 = vshrl.u32 %v923, 7
    %v925 = vsub.s32 5, %v924
    %v926 = vrot.slane %v868, %v925
    %v927 = vlaneseq
    %v928 = vshrl.u32 %v927, 7
    %v929 = vsub.s32 7, %v928
    %v930 = vrot.slane %v868, %v929
    %v935 = vlaneseq
    %v936 = vshrl.u32 %v935, 7
    %v937 = vsub.s32 1, %v936
    %v938 = vrot.slane %v918, %v937
    %v939 = vlaneseq
    %v940 = vshrl.u32 %v939, 7
    %v941 = vsub.s32 1, %v940
    %v942 = vrot.slane %v922, %v941
    %v943 = vlaneseq
    %v944 = vshrl.u32 %v943, 7
    %v945 = vsub.s32 1, %v944
    %v946 = vrot.slane %v926, %v945
    %v947 = vlaneseq
    %v948 = vshrl.u32 %v947, 7
    %v949 = vsub.s32 1, %v948
    %v950 = vrot.slane %v930, %v949
    %v951 = vmul.f32 %v864, %v938
    %v952 = vmul.f32 %v865, %v942
    %v953 = vmul.f32 %v866, %v946
    %v954 = vmul.f32 %v867, %v950
    %v955 = vadd.f32 %v951, %v952
    %v956 = vadd.f32 %v955, %v953
    %v957 = vadd.f32 %v956, %v954
    %958 = vadd.xlane.f32.xlu0 %v957
    %v959 = vpop.xlane.xlu0 %958
    %vm960 = vcmask 7168
    %v961 = vsel %vm960, %v914, %v959
    %v962 = vld [vmem:[%s4] sm:$0x1]
    %v964 = vlaneseq
    %v965 = vshrl.u32 %v964, 7
    %v966 = vsub.s32 0, %v965
    %v967 = vrot.slane %v962, %v966
    %v969 = vadd.f32 %v961, %v967
    %vm970 = vcmask 15360
    %971 = vst.msk [vmem:[%s5] sm:$0xff] %vm970, %v969
    // Predicated region
    $region34: #{tpu_custom_call.1} parent=1 // pred_check
      _
    $region35: #{tpu_custom_call.1} parent=1 // pred_check_branch
      %973 = sbr.rel (0) target = $region37
    $region36: #{tpu_custom_call.1} parent=1 // pred_region
      _
    $region37: #{tpu_custom_call.1} parent=1 // pred_fallthru
      _
    // Predicated region
    $region38: #{tpu_custom_call.1} parent=1 // pred_check
      _
    $region39: #{tpu_custom_call.1} parent=1 // pred_check_branch
      %975 = sbr.rel (0) target = $region41
    $region40: #{tpu_custom_call.1} parent=1 // pred_region
      _
    $region41: #{tpu_custom_call.1} parent=1 // pred_fallthru
      _
    %976 = vsyncpa [#allocation3], 1
    %977 = vsyncpa [#allocation5], 1

</llo_original>
